<compile_context>
chip_gen: v5e
topology: v5e:2x2
jax: 0.10.0
libtpu: 0.0.40
codegen_flags: <defaults>
</compile_context>

<pallas_src>
import jax
import jax.numpy as jnp
from jax.experimental import pallas as pl
from jax.experimental.pallas import tpu as pltpu

LANE = 128
SUBLANE = 8


def outconv_kernel(x_ref, w_ref, b_ref, o_ref):
    # x_ref: (Bt*Cin,  HWt)     folded input block (batch folded into sublanes)
    # w_ref: (Bt*Cout, Bt*Cin)  block-diagonal 1x1-conv weight = kron(I_Bt, W)
    # b_ref: (Bt*Cout, 1)       folded bias (f32)
    # o_ref: (Bt*Cout, HWt)     folded output block
    y = jnp.dot(w_ref[...], x_ref[...], preferred_element_type=jnp.float32)
    o_ref[...] = (y + b_ref[...]).astype(o_ref.dtype)


def _round_up(v, m):
    return ((v + m - 1) // m) * m


def _round_down(v, m):
    return (v // m) * m


def _vmem_capacity_bytes():
    """Per-core VMEM capacity; conservative fallback if the query fails."""
    try:
        info = pltpu.get_tpu_info()
        cap = getattr(info, "vmem_capacity_bytes", None)
        if cap:
            return int(cap)
    except Exception:
        pass
    return 64 << 20  # v7x per-TensorCore VMEM (smallest of the three gens)


def _choose_batch_tile(B, Cin, Cout, itemsize, max_in_rows, max_wbd_bytes):
    """Pick a batch tile Bt that (a) divides B, (b) keeps the folded row
    extents either 8-aligned or full-extent (layout-legal, no sublane padding),
    and (c) keeps the block-diagonal weight small."""
    def fits(bt):
        return (bt * Cin <= max_in_rows
                and bt * bt * Cin * Cout * itemsize <= max_wbd_bytes)

    if fits(B):
        return B  # whole batch per block: row extents equal full folded axes
    for bt in range(B - 1, 0, -1):
        if B % bt:
            continue
        if not fits(bt):
            continue
        if (bt * Cin) % SUBLANE == 0 and (bt * Cout) % SUBLANE == 0:
            return bt
    return B  # fallback: whole batch (still correct, just bigger blocks)


def outconv(x_nchw, weight, bias):
    """1x1 convolution (nn.Conv2d(in, out, kernel_size=1)).

    x_nchw : (B, Cin, H, W)
    weight : (Cout, Cin, 1, 1)
    bias   : (Cout,)
    returns: (B, Cout, H, W)
    """
    B, Cin, H, W = x_nchw.shape
    Cout = weight.shape[0]
    HW = H * W
    dtype = x_nchw.dtype
    itemsize = jnp.dtype(dtype).itemsize

    # ---- per-generation VMEM budget ---------------------------------------
    vmem_cap = _vmem_capacity_bytes()
    vmem_limit = (vmem_cap * 3) // 4        # 48 MiB on v7x, 96 MiB on v5e/v6e
    block_budget = vmem_limit // 2          # for double-buffered in+out blocks
    in_block_target = vmem_limit // 8       # ~6 MiB (v7x) / ~12 MiB (v5e/v6e)

    # ---- batch tile ---------------------------------------------------------
    max_in_rows = max(Cin, in_block_target // (LANE * itemsize))
    Bt = _choose_batch_tile(B, Cin, Cout, itemsize, max_in_rows,
                            max_wbd_bytes=1 << 20)
    n_b = pl.cdiv(B, Bt)  # Bt divides B by construction

    in_rows, out_rows = Bt * Cin, Bt * Cout
    # *padded* sublane footprint (what VMEM actually allocates)
    in_rows_pad = _round_up(in_rows, SUBLANE)
    out_rows_pad = _round_up(out_rows, SUBLANE)

    # ---- lane (HW) tile: 128-aligned, padded-byte budgeted, multi-step ------
    if HW <= LANE:
        HWt = HW                            # full-extent lane block (legal for any HW)
    else:
        per_col_bytes = 2 * (in_rows_pad + out_rows_pad) * itemsize  # 2x = dbl-buffered
        hwt_budget = max(LANE, block_budget // per_col_bytes)
        hwt_target = max(LANE, in_block_target // max(1, in_rows_pad * itemsize))
        # guarantee >= min(4, HW/128) grid steps so the pipeline (and v7x's two
        # TensorCores) always have work to overlap / shard
        desired_steps = min(4, pl.cdiv(HW, LANE))
        hwt_steps = max(LANE, _round_down(pl.cdiv(HW, desired_steps), LANE))
        HWt = _round_down(min(hwt_budget, hwt_target, hwt_steps,
                              _round_up(HW, LANE)), LANE)
        HWt = max(HWt, LANE)
    n_hw = pl.cdiv(HW, HWt)

    # ---- zero-copy folded operands ------------------------------------------
    x2d = x_nchw.reshape(B * Cin, HW)
    w2d = weight.reshape(Cout, Cin).astype(dtype)
    w_bd = jnp.kron(jnp.eye(Bt, dtype=dtype), w2d)            # (Bt*Cout, Bt*Cin)
    b_bd = jnp.tile(bias.astype(jnp.float32), Bt).reshape(Bt * Cout, 1)

    cost = pl.CostEstimate(
        flops=2 * B * Cout * Cin * HW,
        transcendentals=0,
        bytes_accessed=(B * Cin * HW + B * Cout * HW) * itemsize
        + w_bd.size * itemsize + b_bd.size * 4,
    )

    out2d = pl.pallas_call(
        outconv_kernel,
        out_shape=jax.ShapeDtypeStruct((B * Cout, HW), dtype),
        grid_spec=pltpu.PrefetchScalarGridSpec(
            num_scalar_prefetch=0,
            grid=(n_b, n_hw),
            in_specs=[
                pl.BlockSpec((in_rows, HWt), lambda b, h: (b, h)),
                pl.BlockSpec((out_rows, in_rows), lambda b, h: (0, 0)),
                pl.BlockSpec((out_rows, 1), lambda b, h: (0, 0)),
            ],
            out_specs=pl.BlockSpec((out_rows, HWt), lambda b, h: (b, h)),
        ),
        compiler_params=pltpu.CompilerParams(
            dimension_semantics=("parallel", "parallel"),
            vmem_limit_bytes=int(vmem_limit)),
        cost_estimate=cost,
    )(x2d, w_bd, b_bd)

    # zero-copy back to NCHW
    return out2d.reshape(B, Cout, H, W)


def outconv_reference(x_nchw, weight, bias):
    """Pure-JAX reference mirroring nn.Conv2d(kernel_size=1)."""
    Cout, Cin = weight.shape[0], weight.shape[1]
    w2d = weight.reshape(Cout, Cin)
    y = jnp.einsum("bchw,oc->bohw", x_nchw, w2d)
    return y + bias.reshape(1, Cout, 1, 1)


if __name__ == "__main__":
    # small shapes consistent with the module (UNet output head):
    # batch=2, in_channels=4, out_channels=2, spatial=16x16
    B, Cin, Cout, H, W = 2, 4, 2, 16, 16

    key = jax.random.PRNGKey(0)
    kx, kw, kb = jax.random.split(key, 3)

    x = jax.random.normal(kx, (B, Cin, H, W), dtype=jnp.float32)
    weight = jax.random.normal(kw, (Cout, Cin, 1, 1), dtype=jnp.float32) * 0.3
    bias = jax.random.normal(kb, (Cout,), dtype=jnp.float32) * 0.1

    out = outconv(x, weight, bias)
    out = jax.block_until_ready(out)

    ref = outconv_reference(x, weight, bias)
    assert out.shape == (B, Cout, H, W)
    assert jnp.allclose(out, ref, atol=1e-5, rtol=1e-5), "mismatch vs reference"

    print("KERNEL_OK")
</pallas_src>

<mosaic_0001>
module attributes {stable_mosaic.version = 11 : i64} {
  func.func @outconv_kernel(%arg0: i32, %arg1: i32, %arg2: memref<8x128xf32, #tpu.memory_space<vmem>>, %arg3: memref<4x8xf32, #tpu.memory_space<vmem>>, %arg4: memref<4x1xf32, #tpu.memory_space<vmem>>, %arg5: memref<4x128xf32, #tpu.memory_space<vmem>>) attributes {dimension_semantics = [#tpu.dimension_semantics<parallel>, #tpu.dimension_semantics<parallel>], iteration_bounds = array<i64: 1, 2>, scalar_prefetch = 0 : i64, scratch_operands = 0 : i64, tpu.core_type = #tpu.core_type<tc>, window_params = [{transform_indices = @transform_0, window_bounds = array<i64: 8, 128>}, {pipeline_mode = #tpu.pipeline_mode<synchronous>, transform_indices = @transform_1, window_bounds = array<i64: 4, 8>}, {pipeline_mode = #tpu.pipeline_mode<synchronous>, transform_indices = @transform_2, window_bounds = array<i64: 4, 1>}, {transform_indices = @transform_3, window_bounds = array<i64: 4, 128>}]} {
    %c0 = arith.constant 0 : index
    %c0_0 = arith.constant 0 : index
    %0 = vector.load %arg3[%c0, %c0_0] : memref<4x8xf32, #tpu.memory_space<vmem>>, vector<4x8xf32>
    %c0_1 = arith.constant 0 : index
    %c0_2 = arith.constant 0 : index
    %1 = vector.load %arg2[%c0_1, %c0_2] : memref<8x128xf32, #tpu.memory_space<vmem>>, vector<8x128xf32>
    %cst = arith.constant dense<0.000000e+00> : vector<4x128xf32>
    %2 = tpu.matmul %0, %1, %cst {dimension_numbers = #tpu.dot_dimension_numbers<[1], [0], [0], [1], [0, 0, 1, 1], [], []>} : vector<4x8xf32>, vector<8x128xf32>, vector<4x128xf32> -> vector<4x128xf32>
    %c0_3 = arith.constant 0 : index
    %c0_4 = arith.constant 0 : index
    %3 = vector.load %arg4[%c0_3, %c0_4] : memref<4x1xf32, #tpu.memory_space<vmem>>, vector<4x1xf32>
    %4 = vector.broadcast %3 : vector<4x1xf32> to vector<4x128xf32>
    %5 = arith.addf %2, %4 : vector<4x128xf32>
    %c0_5 = arith.constant 0 : index
    %c0_6 = arith.constant 0 : index
    %6 = vector.load %arg5[%c0_5, %c0_6] : memref<4x128xf32, #tpu.memory_space<vmem>>, vector<4x128xf32>
    tpu.vector_store %arg5[%c0_5, %c0_6], %5 {strides = array<i32>} : memref<4x128xf32, #tpu.memory_space<vmem>>, vector<4x128xf32>,
    return
  }
  func.func @transform_0(%arg0: i32, %arg1: i32) -> (i32, i32) {
    %c0_i32 = arith.constant 0 : i32
    return %arg0, %arg1 : i32, i32
  }
  func.func @transform_1(%arg0: i32, %arg1: i32) -> (i32, i32) {
    %c0_i32 = arith.constant 0 : i32
    %c0_i32_0 = arith.constant 0 : i32
    %c0_i32_1 = arith.constant 0 : i32
    return %c0_i32, %c0_i32_0 : i32, i32
  }
  func.func @transform_2(%arg0: i32, %arg1: i32) -> (i32, i32) {
    %c0_i32 = arith.constant 0 : i32
    %c0_i32_0 = arith.constant 0 : i32
    %c0_i32_1 = arith.constant 0 : i32
    return %c0_i32, %c0_i32_0 : i32, i32
  }
  func.func @transform_3(%arg0: i32, %arg1: i32) -> (i32, i32) {
    %c0_i32 = arith.constant 0 : i32
    return %arg0, %arg1 : i32, i32
  }
}

</mosaic_0001>

<llo_original>
// kernel: tpu_custom_call.1
$region0: #{tpu_custom_call.1}
  #allocation0 [shape = 'u32[]', space=smem, size = 0x4, offset = 0x4, fixed_abs, tag = 'smem constant byte address 0x4 - core index']
  #allocation1 [shape = 'u32[72,128]{1,0:T(1,128)}', space=vmem, size = 0x9000, scoped, tag = 'internal scratch']
  %s0 = inlined_call_operand.hbm [shape: f32[8,256], index: 0, kind: input, shape index: {}]
  %s1 = inlined_call_operand.vmem [shape: f32[4,8], index: 1, kind: input, shape index: {}]
  %s2 = inlined_call_operand.vmem [shape: f32[4,1], index: 2, kind: input, shape index: {}]
  %s3 = inlined_call_operand.hbm [shape: f32[4,256], index: 3, kind: output, shape index: {}]
  %s4 = sld [smem:[#allocation0]]
  $region49: #{tpu_custom_call.1} parent=0
    _
  %s6 = ssub.s32 1, %s4
  %s7 = scalar_select 0, %s6, %s4
  $region1: #{tpu_custom_call.1} parent=0
    #allocation2 [shape = 'u8[8192]{0}', space=vmem, size = 0x2000, scoped, tag = 'input window, operand 0']
    #allocation3 [shape = 's32[2]{0}', space=sflag, size = 0x8, scoped, tag = 'scoped memory for tpu_custom_call.1']
    #allocation4 [shape = 's32[2]{0}', space=sflag, size = 0x8, scoped, tag = 'scoped memory for tpu_custom_call.1']
    #allocation5 [shape = 'u8[4096]{0}', space=vmem, size = 0x1000, scoped, tag = 'output window, operand 0']
    %8 = vsyncpa [#allocation3], 0
    %s9 = scalar_lea.sflag [#allocation3], 1
    %10 = vsyncpa %s9, 0
    %11 = vsyncpa [#allocation4], 0
    %s12 = scalar_lea.sflag [#allocation4], 1
    %13 = vsyncpa %s12, 0
    loop: start=0, step=1, limit=4
    $region2: #{tpu_custom_call.1} parent=1 // loop_pre_header
      _
    $region3: #{tpu_custom_call.1} parent=1 // loop_header
      %s15 = sphi 0, %s19
      %p16 = scmp.ge.s32.totalorder %s15, 4
      %s22 = sphi 0, %s34
      %s23 = sphi 0, %s30
      %s24 = sphi 0, %s22
      %s25 = sphi 0, %s23
      %s26 = sphi 0, %s24
      %s27 = sphi 0, %s25
      %s39 = sphi 0, %s41
      %s42 = sphi 0, %s39
      %s43 = sphi 0, %s42
      %s59 = sphi 0, %s43
      %s63 = sphi 0, %s63
      %s65 = sphi 0, %s63
      %s66 = sphi 0, %s65
      %s80 = sphi 0, %s66
      %s84 = sphi 0, %s84
      %s86 = sphi 0, %s84
      %s87 = sphi 0, %s86
      %s101 = sphi 0, %s87
      %s109 = sphi 0, %s111
      %s112 = sphi 0, %s109
      %s113 = sphi 0, %s112
      %s129 = sphi 0, %s113
    $region4: #{tpu_custom_call.1} parent=1 // loop_header_branch
      %18 = sbr.rel (%p16) target = $region8
    $region5: #{tpu_custom_call.1} parent=1 // loop_body
      %s20 = ssub.s32 %s15, 1
      %s21 = ssub.s32 %s15, 2
      %s28 = sadd.s32 1, %s23
      %p29 = scmp.ge.s32.totalorder %s28, 2
      %s30 = scalar_select %p29, 0, %s28
      %s31 = sadd.s32 1, %s22
      %s32 = scalar_select %p29, %s31, %s22
      %p33 = scmp.ge.s32.totalorder %s32, 1
      %s34 = scalar_select %p33, 0, %s32
      %s35 = ssub.s32 %s22, %s34
      %s36 = ssub.s32 %s23, %s30
      %s37 = sor.u32 %s35, %s36
      %p38 = scmp.eq.s32.totalorder %s37, 0
      %s40 = sadd.s32 %s39, 1
      %s41 = scalar_select %p38, %s39, %s40
      %p44 = pneg %p38
      %p45 = scmp.eq.s32.totalorder %s15, 1
      %p46 = por %p44, %p45
      %p47 = scmp.ne.s32.totalorder %s39, %s42
      %p48 = scmp.eq.s32.totalorder %s15, 0
      %p49 = por %p47, %p48
      %p50 = scmp.ne.s32.totalorder %s39, %s42
      %p51 = scmp.eq.s32.totalorder %s20, 1
      %p52 = por %p50, %p51
      %p53 = scmp.ne.s32.totalorder %s42, %s43
      %p54 = scmp.eq.s32.totalorder %s20, 0
      %p55 = por %p53, %p54
      %p56 = scmp.ne.s32.totalorder %s42, %s43
      %p57 = scmp.eq.s32.totalorder %s21, 1
      %p58 = por %p56, %p57
      %p60 = scmp.ne.s32.totalorder %s43, %s59
      %p61 = scmp.eq.s32.totalorder %s21, 0
      %p62 = por %p60, %p61
      %s64 = sadd.s32 %s63, 1
      %p67 = scmp.eq.s32.totalorder %s15, 1
      %p68 = scmp.ne.s32.totalorder %s63, %s65
      %p69 = scmp.eq.s32.totalorder %s15, 0
      %p70 = por %p68, %p69
      %p71 = scmp.ne.s32.totalorder %s63, %s65
      %p72 = scmp.eq.s32.totalorder %s20, 1
      %p73 = por %p71, %p72
      %p74 = scmp.ne.s32.totalorder %s65, %s66
      %p75 = scmp.eq.s32.totalorder %s20, 0
      %p76 = por %p74, %p75
      %p77 = scmp.ne.s32.totalorder %s65, %s66
      %p78 = scmp.eq.s32.totalorder %s21, 1
      %p79 = por %p77, %p78
      %p81 = scmp.ne.s32.totalorder %s66, %s80
      %p82 = scmp.eq.s32.totalorder %s21, 0
      %p83 = por %p81, %p82
      %s85 = sadd.s32 %s84, 1
      %p88 = scmp.eq.s32.totalorder %s15, 1
      %p89 = scmp.ne.s32.totalorder %s84, %s86
      %p90 = scmp.eq.s32.totalorder %s15, 0
      %p91 = por %p89, %p90
      %p92 = scmp.ne.s32.totalorder %s84, %s86
      %p93 = scmp.eq.s32.totalorder %s20, 1
      %p94 = por %p92, %p93
      %p95 = scmp.ne.s32.totalorder %s86, %s87
      %p96 = scmp.eq.s32.totalorder %s20, 0
      %p97 = por %p95, %p96
      %p98 = scmp.ne.s32.totalorder %s86, %s87
      %p99 = scmp.eq.s32.totalorder %s21, 1
      %p100 = por %p98, %p99
      %p102 = scmp.ne.s32.totalorder %s87, %s101
      %p103 = scmp.eq.s32.totalorder %s21, 0
      %p104 = por %p102, %p103
      %s105 = ssub.s32 %s22, %s34
      %s106 = ssub.s32 %s23, %s30
      %s107 = sor.u32 %s105, %s106
      %p108 = scmp.eq.s32.totalorder %s107, 0
      %s110 = sadd.s32 %s109, 1
      %s111 = scalar_select %p108, %s109, %s110
      %p114 = pneg %p108
      %p115 = scmp.eq.s32.totalorder %s15, 1
      %p116 = por %p114, %p115
      %p117 = scmp.ne.s32.totalorder %s109, %s112
      %p118 = scmp.eq.s32.totalorder %s15, 0
      %p119 = por %p117, %p118
      %p120 = scmp.ne.s32.totalorder %s109, %s112
      %p121 = scmp.eq.s32.totalorder %s20, 1
      %p122 = por %p120, %p121
      %p123 = scmp.ne.s32.totalorder %s112, %s113
      %p124 = scmp.eq.s32.totalorder %s20, 0
      %p125 = por %p123, %p124
      %p126 = scmp.ne.s32.totalorder %s112, %s113
      %p127 = scmp.eq.s32.totalorder %s21, 1
      %p128 = por %p126, %p127
      %p130 = scmp.ne.s32.totalorder %s113, %s129
      %p131 = scmp.eq.s32.totalorder %s21, 0
      %p132 = por %p130, %p131
      %p133 = scmp.le.s32.totalorder 1, %s15
      %p134 = scmp.lt.s32.totalorder %s15, 3
      %p135 = pnand %p133, %p134
      %p136 = pneg %p135
      // Predicated region
      $region9: #{tpu_custom_call.1} parent=5 // pred_check
        _
      $region10: #{tpu_custom_call.1} parent=5 // pred_check_branch
        %138 = sbr.rel (%p135) target = $region12
      $region11: #{tpu_custom_call.1} parent=5 // pred_region
        %s139 = ssub.s32 %s15, 1
        // Predicated region
        $region13: #{tpu_custom_call.1} parent=11 // pred_check
          %p140 = pneg %p76
        $region14: #{tpu_custom_call.1} parent=11 // pred_check_branch
          %142 = sbr.rel (%p140) target = $region16
        $region15: #{tpu_custom_call.1} parent=11 // pred_region
          _
        $region16: #{tpu_custom_call.1} parent=11 // pred_fallthru
          _
        // Predicated region
        $region17: #{tpu_custom_call.1} parent=11 // pred_check
          %p143 = pneg %p97
        $region18: #{tpu_custom_call.1} parent=11 // pred_check_branch
          %145 = sbr.rel (%p143) target = $region20
        $region19: #{tpu_custom_call.1} parent=11 // pred_region
          _
        $region20: #{tpu_custom_call.1} parent=11 // pred_fallthru
          _
      $region12: #{tpu_custom_call.1} parent=5 // pred_fallthru
        _
      %p146 = scmp.lt.s32.totalorder %s15, 2
      // Predicated region
      $region21: #{tpu_custom_call.1} parent=5 // pred_check
        %p147 = pneg %p146
      $region22: #{tpu_custom_call.1} parent=5 // pred_check_branch
        %149 = sbr.rel (%p147) target = $region24
      $region23: #{tpu_custom_call.1} parent=5 // pred_region
        // Predicated region
        $region25: #{tpu_custom_call.1} parent=23 // pred_check
          %p150 = pneg %p49
        $region26: #{tpu_custom_call.1} parent=23 // pred_check_branch
          %152 = sbr.rel (%p150) target = $region28
        $region27: #{tpu_custom_call.1} parent=23 // pred_region
          %s153 = sand.u32 %s39, 1
          %s154 = scalar_lea.sflag [#allocation3], %s153
          %s155 = sand.u32 %s39, 1
          %s156 = smul.addr %s155, 8
          %s157 = scalar_lea.vmem [#allocation2], %s156
          %159 = vsyncadd %s154, 0
          %s160 = smul.addr %s22, 2
          %s161 = sadd.s32 %s23, %s160
          %s162 = smul.addr %s161, 8
          %s163 = scalar_lea.hbm %s0, %s162
          %s165 = sshll.u32 %s163, 4
          %s166 = int_to_ptr.hbm [resolvable:$true] %s165
          %s167 = sshll.u32 %s157, 4
          %s168 = int_to_ptr.vmem [resolvable:$true] %s167
          %170 = dma.hbm_to_vmem [thread:$0]  %s166, 128, %s168, %s154
        $region28: #{tpu_custom_call.1} parent=23 // pred_fallthru
          _
      $region24: #{tpu_custom_call.1} parent=5 // pred_fallthru
        _
      %p171 = scmp.le.s32.totalorder 1, %s15
      %p172 = scmp.lt.s32.totalorder %s15, 3
      %p173 = pnand %p171, %p172
      %p174 = pneg %p173
      // Predicated region
      $region29: #{tpu_custom_call.1} parent=5 // pred_check
        _
      $region30: #{tpu_custom_call.1} parent=5 // pred_check_branch
        %176 = sbr.rel (%p173) target = $region32
      $region31: #{tpu_custom_call.1} parent=5 // pred_region
        %s177 = ssub.s32 %s15, 1
        %s178 = sand.u32 %s42, 1
        %s179 = scalar_lea.sflag [#allocation3], %s178
        %s180 = sand.u32 %s42, 1
        %s181 = smul.addr %s180, 8
        %s182 = scalar_lea.vmem [#allocation2], %s181
        // Predicated region
        $region33: #{tpu_custom_call.1} parent=31 // pred_check
          %p183 = pneg %p55
        $region34: #{tpu_custom_call.1} parent=31 // pred_check_branch
          %185 = sbr.rel (%p183) target = $region36
        $region35: #{tpu_custom_call.1} parent=31 // pred_region
          %187 = dma.done %s179, 128
        $region36: #{tpu_custom_call.1} parent=31 // pred_fallthru
          _
        %s188 = sand.u32 %s42, 1
        %s189 = scalar_lea.sflag [#allocation3], %s188
        %s190 = sand.u32 %s42, 1
        %s191 = smul.addr %s190, 8
        %s192 = scalar_lea.vmem [#allocation2], %s191
        %p193 = pneg %p55
        %p194 = pneg %p52
        %p195 = pneg %p76
        %p196 = pneg %p73
        %p197 = pneg %p97
        %p198 = pneg %p94
        %p199 = pneg %p125
        %p200 = pneg %p122
        %s201 = sand.u32 %s112, 1
        %s202 = scalar_lea.sflag [#allocation4], %s201
        %s203 = sand.u32 %s112, 1
        %s204 = smul.addr %s203, 4
        %s205 = scalar_lea.vmem [#allocation5], %s204
        %v206 = vld [vmem:[%s1] sm:$0xf]
        %v207 = vld [vmem:[%s182] sm:$0xff]
        %v208 = vld [vmem:[%s2] sm:$0xf]
        %210 = vset.pattern.permute.xlu0 0
        %211 = vperm.xlu0 %210, %v208
        %v212 = vpop.permute.xlu0 %211
        %vm214 = vcmask 64512
        %v216 = vsel %vm214, %v206, 0
        %218 = vmatpush.msra.mxu0 0.0
        %219 = vmatpush.msra.mxu0 0.0
        %220 = vmatpush.msra.mxu0 0.0
        %221 = vmatpush.msra.mxu0 0.0
        %222 = vmatpush.msra.mxu0 0.0
        %223 = vmatpush.msra.mxu0 0.0
        %224 = vmatpush.msra.mxu0 0.0
        %225 = vmatpush.msra.mxu0 0.0
        %226 = vmatpush.msra.mxu0 0.0
        %227 = vmatpush.msra.mxu0 0.0
        %228 = vmatpush.msra.mxu0 0.0
        %229 = vmatpush.msra.mxu0 0.0
        %230 = vmatpush.msra.mxu0 0.0
        %231 = vmatpush.msra.mxu0 0.0
        %232 = vmatpush.msra.mxu0 0.0
        %233 = vmatpush.msra.mxu0 %v207
        %234 = vmatmul.f32.gmra.mxu0 %v216
        %v235 = vpop.f32.mrf.mxu0
        %v236 = vadd.f32 %v212, %v235
        %237 = vdwg.mxu0
        %238 = vst [vmem:[%s205] sm:$0xf] %v236
        %s239 = sand.u32 %s112, 1
        %s240 = scalar_lea.sflag [#allocation4], %s239
        %s241 = sand.u32 %s112, 1
        %s242 = smul.addr %s241, 4
        %s243 = scalar_lea.vmem [#allocation5], %s242
        // Predicated region
        $region37: #{tpu_custom_call.1} parent=31 // pred_check
          %p244 = pneg %p122
        $region38: #{tpu_custom_call.1} parent=31 // pred_check_branch
          %246 = sbr.rel (%p244) target = $region40
        $region39: #{tpu_custom_call.1} parent=31 // pred_region
          %248 = vsyncadd %s240, 0
          %s249 = smul.addr %s24, 2
          %s250 = sadd.s32 %s25, %s249
          %s251 = smul.addr %s250, 4
          %s252 = scalar_lea.hbm %s3, %s251
          %s254 = sshll.u32 %s243, 4
          %s255 = int_to_ptr.vmem [resolvable:$true] %s254
          %s256 = sshll.u32 %s252, 4
          %s257 = int_to_ptr.hbm [resolvable:$true] %s256
          %259 = dma.vmem_to_hbm [thread:$0]  %s255, 64, %s257, %s240
        $region40: #{tpu_custom_call.1} parent=31 // pred_fallthru
          _
      $region32: #{tpu_custom_call.1} parent=5 // pred_fallthru
        _
      %p260 = scmp.le.s32.totalorder 2, %s15
      // Predicated region
      $region41: #{tpu_custom_call.1} parent=5 // pred_check
        %p261 = pneg %p260
      $region42: #{tpu_custom_call.1} parent=5 // pred_check_branch
        %263 = sbr.rel (%p261) target = $region44
      $region43: #{tpu_custom_call.1} parent=5 // pred_region
        %s264 = ssub.s32 %s15, 2
        // Predicated region
        $region45: #{tpu_custom_call.1} parent=43 // pred_check
          %p265 = pneg %p128
        $region46: #{tpu_custom_call.1} parent=43 // pred_check_branch
          %267 = sbr.rel (%p265) target = $region48
        $region47: #{tpu_custom_call.1} parent=43 // pred_region
          %s268 = sand.u32 %s113, 1
          %s269 = scalar_lea.sflag [#allocation4], %s268
          %s270 = sand.u32 %s113, 1
          %s271 = smul.addr %s270, 4
          %s272 = scalar_lea.vmem [#allocation5], %s271
          %274 = dma.done %s269, 64
        $region48: #{tpu_custom_call.1} parent=43 // pred_fallthru
          _
      $region44: #{tpu_custom_call.1} parent=5 // pred_fallthru
        _
    $region6: #{tpu_custom_call.1} parent=1 // loop_footer
      %s19 = sadd.s32 1, %s15
    $region7: #{tpu_custom_call.1} parent=1 // loop_footer_branch
      %14 = sbr.rel target = $region3
    $region8: #{tpu_custom_call.1} parent=1 // loop_exit
      _
    %275 = vsyncpa [#allocation3], 1
    %s276 = scalar_lea.sflag [#allocation3], 1
    %277 = vsyncpa %s276, 1
    %278 = vsyncpa [#allocation4], 1
    %s279 = scalar_lea.sflag [#allocation4], 1
    %280 = vsyncpa %s279, 1

</llo_original>
